<compile_context>
chip_gen: v6e
topology: v6e:2x2x1
jax: 0.10.0
libtpu: 0.0.40
codegen_flags: <defaults>
</compile_context>

<pallas_src>
import functools

import jax
import jax.numpy as jnp
from jax.experimental import pallas as pl
from jax.experimental.pallas import tpu as pltpu


# ----------------------------- Pallas kernel ------------------------------- #
def _head_kernel(x_ref, w_ref, b_ref, o_ref):
    # x_ref: (TB, E) bf16 features   w_ref: (E, C) bf16 weights (resident)
    # b_ref: (1, C)  f32 bias        o_ref: (TB, C) f32 probabilities
    logits = jnp.dot(x_ref[...], w_ref[...],
                     preferred_element_type=jnp.float32)   # MXU, f32 accum
    logits = logits + b_ref[...]                           # VPU broadcast add
    o_ref[...] = jax.nn.sigmoid(logits).astype(o_ref.dtype)  # EUP exp + VPU


# ------------------------------- Wrapper ------------------------------------ #
@functools.partial(jax.jit, static_argnames=("block_b",))
def tile_classifier_head(feats, w, b, *, block_b=512):
    """sigmoid(feats @ w + b) via a batch-tiled Pallas kernel.

    feats: [B, E] backbone features (any float dtype; cast to bf16 for the MXU)
    w:     [E, C] head weight (transposed from torch Linear's [C, E])
    b:     [C]    head bias
    returns [B, C] float32 probabilities

    NOTE: at toy sizes (B~2, E~32) a plain XLA matmul+sigmoid is already
    optimal; the Pallas path pays off at realistic DINO shapes (E=768/1024,
    large B).  It is always used here so the kernel is exercised.
    """
    B, E = feats.shape
    Ew, C = w.shape
    assert Ew == E, (Ew, E)

    # bf16 inputs for the MXU (halves HBM traffic); accumulation stays f32.
    feats = feats.astype(jnp.bfloat16)
    w = w.astype(jnp.bfloat16)
    b = b.reshape(1, C).astype(jnp.float32)

    # Batch tile: either the full batch (block dim == array dim always
    # satisfies the tiling rule) or a 512-row tile (multiple of 16 for bf16).
    tb = B if B <= block_b else block_b
    grid = (pl.cdiv(B, tb),)

    return pl.pallas_call(
        _head_kernel,
        out_shape=jax.ShapeDtypeStruct((B, C), jnp.float32),
        grid=grid,
        in_specs=[
            pl.BlockSpec((tb, E), lambda i: (i, 0)),   # feats: streamed over B
            pl.BlockSpec((E, C), lambda i: (0, 0)),    # W: resident in VMEM
            pl.BlockSpec((1, C), lambda i: (0, 0)),    # bias: resident
        ],
        out_specs=pl.BlockSpec((tb, C), lambda i: (i, 0)),
        compiler_params=pltpu.CompilerParams(
            dimension_semantics=("parallel",),         # shard batch tiles (v7x 2 TCs)
        ),
    )(feats, w, b)


# --------------------------- Stand-in backbone ----------------------------- #
# TODO(synk): the real frozen DINO ViT backbone is an external torch module with
# no clean Pallas equivalent here; a deterministic frozen linear+tanh projection
# (stop_gradient == torch.no_grad semantics) stands in, emitting bf16 features
# so the head kernel reads half-width activations directly.
def standin_backbone(x_nchw, proj):
    B = x_nchw.shape[0]
    flat = x_nchw.reshape(B, -1)
    feats = jnp.tanh(flat @ proj).astype(jnp.bfloat16)
    return jax.lax.stop_gradient(feats)


# --------------------------------- Demo ------------------------------------ #
if __name__ == "__main__":
    key = jax.random.PRNGKey(0)
    k_x, k_proj, k_w, k_b = jax.random.split(key, 4)

    # Small shapes consistent with the module's forward:
    #   image x: [B, C, H, W] (NCHW, as PyTorch), embedding_size=32, num_classes=8
    B, C_in, H, W = 2, 4, 16, 16
    embedding_size = 32
    num_classes = 8

    x = jax.random.normal(k_x, (B, C_in, H, W), jnp.float32)

    # Deterministic frozen backbone projection (stand-in for DINO).
    proj = 0.02 * jax.random.normal(
        k_proj, (C_in * H * W, embedding_size), jnp.float32)

    # Head parameters: nn.Linear(embedding_size, num_classes)
    #   torch weight shape: [num_classes, embedding_size]; we use its transpose.
    w_torch = 0.1 * jax.random.normal(
        k_w, (num_classes, embedding_size), jnp.float32)
    b_head = 0.1 * jax.random.normal(k_b, (num_classes,), jnp.float32)
    w_head = w_torch.T  # [embedding_size, num_classes]

    feats = standin_backbone(x, proj)                    # [B, embedding_size] bf16
    probs = tile_classifier_head(feats, w_head, b_head)  # [B, num_classes] f32
    probs = jax.block_until_ready(probs)

    # Sanity check against a pure-JAX reference using the same bf16 inputs
    # (f32 accumulation), mirroring what the kernel computes.
    ref = jax.nn.sigmoid(
        jnp.dot(feats.astype(jnp.float32),
                w_head.astype(jnp.bfloat16).astype(jnp.float32))
        + b_head.astype(jnp.float32))
    assert probs.shape == (B, num_classes)
    assert probs.dtype == jnp.float32
    assert jnp.allclose(probs, ref, atol=1e-4, rtol=1e-4)

    print("KERNEL_OK")
</pallas_src>

<mosaic_0001>
module attributes {stable_mosaic.version = 11 : i64} {
  func.func @_head_kernel(%arg0: i32, %arg1: memref<2x32xbf16, #tpu.memory_space<vmem>>, %arg2: memref<32x8xbf16, #tpu.memory_space<vmem>>, %arg3: memref<1x8xf32, #tpu.memory_space<vmem>>, %arg4: memref<2x8xf32, #tpu.memory_space<vmem>>) attributes {dimension_semantics = [#tpu.dimension_semantics<parallel>], iteration_bounds = array<i64: 1>, scalar_prefetch = 0 : i64, scratch_operands = 0 : i64, tpu.core_type = #tpu.core_type<tc>, window_params = [{transform_indices = @transform_0, window_bounds = array<i64: 2, 32>}, {pipeline_mode = #tpu.pipeline_mode<synchronous>, transform_indices = @transform_1, window_bounds = array<i64: 32, 8>}, {pipeline_mode = #tpu.pipeline_mode<synchronous>, transform_indices = @transform_2, window_bounds = array<i64: 1, 8>}, {transform_indices = @transform_3, window_bounds = array<i64: 2, 8>}]} {
    %c0 = arith.constant 0 : index
    %c0_0 = arith.constant 0 : index
    %0 = vector.load %arg1[%c0, %c0_0] : memref<2x32xbf16, #tpu.memory_space<vmem>>, vector<2x32xbf16>
    %c0_1 = arith.constant 0 : index
    %c0_2 = arith.constant 0 : index
    %1 = vector.load %arg2[%c0_1, %c0_2] : memref<32x8xbf16, #tpu.memory_space<vmem>>, vector<32x8xbf16>
    %cst = arith.constant dense<0.000000e+00> : vector<2x8xf32>
    %2 = tpu.matmul %0, %1, %cst {dimension_numbers = #tpu.dot_dimension_numbers<[1], [0], [0], [1], [0, 0, 1, 1], [], []>} : vector<2x32xbf16>, vector<32x8xbf16>, vector<2x8xf32> -> vector<2x8xf32>
    %c0_3 = arith.constant 0 : index
    %c0_4 = arith.constant 0 : index
    %3 = vector.load %arg3[%c0_3, %c0_4] : memref<1x8xf32, #tpu.memory_space<vmem>>, vector<1x8xf32>
    %4 = vector.broadcast %3 : vector<1x8xf32> to vector<2x8xf32>
    %5 = arith.addf %2, %4 : vector<2x8xf32>
    %6 = arith.negf %5 : vector<2x8xf32>
    %7 = math.exp %6 : vector<2x8xf32>
    %cst_5 = arith.constant 1.000000e+00 : f32
    %8 = vector.broadcast %cst_5 : f32 to vector<2x8xf32>
    %9 = arith.addf %8, %7 : vector<2x8xf32>
    %10 = arith.divf %8, %9 : vector<2x8xf32>
    %c0_6 = arith.constant 0 : index
    %c0_7 = arith.constant 0 : index
    %11 = vector.load %arg4[%c0_6, %c0_7] : memref<2x8xf32, #tpu.memory_space<vmem>>, vector<2x8xf32>
    tpu.vector_store %arg4[%c0_6, %c0_7], %10 {strides = array<i32>} : memref<2x8xf32, #tpu.memory_space<vmem>>, vector<2x8xf32>,
    return
  }
  func.func @transform_0(%arg0: i32) -> (i32, i32) {
    %c0_i32 = arith.constant 0 : i32
    %c0_i32_0 = arith.constant 0 : i32
    return %arg0, %c0_i32 : i32, i32
  }
  func.func @transform_1(%arg0: i32) -> (i32, i32) {
    %c0_i32 = arith.constant 0 : i32
    %c0_i32_0 = arith.constant 0 : i32
    %c0_i32_1 = arith.constant 0 : i32
    return %c0_i32, %c0_i32_0 : i32, i32
  }
  func.func @transform_2(%arg0: i32) -> (i32, i32) {
    %c0_i32 = arith.constant 0 : i32
    %c0_i32_0 = arith.constant 0 : i32
    %c0_i32_1 = arith.constant 0 : i32
    return %c0_i32, %c0_i32_0 : i32, i32
  }
  func.func @transform_3(%arg0: i32) -> (i32, i32) {
    %c0_i32 = arith.constant 0 : i32
    %c0_i32_0 = arith.constant 0 : i32
    return %arg0, %c0_i32 : i32, i32
  }
}

</mosaic_0001>

<llo_original>
// kernel: tile_classifier_head.1
$region0: #{tile_classifier_head.1}
  #allocation0 [shape = 'u32[]', space=smem, size = 0x4, offset = 0x4, fixed_abs, tag = 'smem constant byte address 0x4 - core index']
  #allocation1 [shape = 'u32[144,128]{1,0:T(1,128)}', space=vmem, size = 0x12000, scoped, tag = 'internal scratch']
  %s0 = inlined_call_operand.vmem [shape: bf16[2,32], index: 0, kind: input, shape index: {}]
  %s1 = inlined_call_operand.vmem [shape: bf16[32,8], index: 1, kind: input, shape index: {}]
  %s2 = inlined_call_operand.vmem [shape: f32[1,8], index: 2, kind: input, shape index: {}]
  %s3 = inlined_call_operand.hbm [shape: f32[2,8], index: 3, kind: output, shape index: {}]
  %s4 = sld [smem:[#allocation0]]
  $region22: #{tile_classifier_head.1} parent=0
    _
  %s6 = ssub.s32 1, %s4
  %s7 = scalar_select 0, %s6, %s4
  $region1: #{tile_classifier_head.1} parent=0
    #allocation2 [shape = 'u8[1024]{0}', space=vmem, size = 0x400, scoped, tag = 'output window, operand 0, single buffered']
    #allocation3 [shape = 's32[1]{0}', space=sflag, size = 0x4, scoped, tag = 'scoped memory for tile_classifier_head.1']
    %8 = vsyncpa [#allocation3], 0
    // Predicated region
    $region2: #{tile_classifier_head.1} parent=1 // pred_check
      _
    $region3: #{tile_classifier_head.1} parent=1 // pred_check_branch
      %10 = sbr.rel (0) target = $region5
    $region4: #{tile_classifier_head.1} parent=1 // pred_region
      _
    $region5: #{tile_classifier_head.1} parent=1 // pred_fallthru
      _
    // Predicated region
    $region6: #{tile_classifier_head.1} parent=1 // pred_check
      _
    $region7: #{tile_classifier_head.1} parent=1 // pred_check_branch
      %12 = sbr.rel (0) target = $region9
    $region8: #{tile_classifier_head.1} parent=1 // pred_region
      _
    $region9: #{tile_classifier_head.1} parent=1 // pred_fallthru
      _
    // Predicated region
    $region10: #{tile_classifier_head.1} parent=1 // pred_check
      _
    $region11: #{tile_classifier_head.1} parent=1 // pred_check_branch
      %14 = sbr.rel (0) target = $region13
    $region12: #{tile_classifier_head.1} parent=1 // pred_region
      _
    $region13: #{tile_classifier_head.1} parent=1 // pred_fallthru
      _
    %v16 = vld [vmem:[%s0] sm:$0x1]
    %v17 = vld [vmem:[%s1] sm:$0xf]
    %v18 = vld [vmem:[%s1 + $0x4] sm:$0xf]
    %v19 = vld [vmem:[%s1 + $0x8] sm:$0xf]
    %v20 = vld [vmem:[%s1 + $0xc] sm:$0xf]
    %v21 = vld [vmem:[%s2] sm:$0x1]
    %v23 = vlaneseq
    %v24 = vshrl.u32 %v23, 7
    %v25 = vsub.s32 0, %v24
    %v26 = vrot.slane %v21, %v25
    %v32 = vunpack.c.l.b16 %v17
    %v33 = vunpack.c.l.b16 %v18
    %v34 = vunpack.c.l.b16 %v19
    %v35 = vunpack.c.l.b16 %v20
    %v36 = vpack.c.b16 %v33, %v32
    %v37 = vpack.c.b16 %v35, %v34
    %vm40 = vcmask 261120
    %v42 = vsel %vm40, %v16, 0
    %44 = vmatprep.subr.bf16.mxu0 0
    %45 = vmatpush1.bf16.msra.mxu0 0
    %46 = vmatprep.subr.bf16.mxu0 0
    %47 = vmatpush1.bf16.msra.mxu0 0
    %48 = vmatprep.subr.bf16.mxu0 0
    %49 = vmatpush1.bf16.msra.mxu0 0
    %50 = vmatprep.subr.bf16.mxu0 0
    %51 = vmatpush1.bf16.msra.mxu0 0
    %52 = vmatprep.subr.bf16.mxu0 0
    %53 = vmatpush1.bf16.msra.mxu0 0
    %54 = vmatprep.subr.bf16.mxu0 0
    %55 = vmatpush1.bf16.msra.mxu0 0
    %56 = vmatprep.subr.bf16.mxu0 0
    %57 = vmatpush1.bf16.msra.mxu0 %v37
    %58 = vmatprep.subr.bf16.mxu0 0
    %59 = vmatpush1.bf16.msra.mxu0 %v36
    %60 = vmatprep.subr.bf16.mxu0 0
    %61 = vmatpush2.bf16.msra.mxu0 0
    %62 = vmatprep.subr.bf16.mxu0 0
    %63 = vmatpush2.bf16.msra.mxu0 0
    %64 = vmatprep.subr.bf16.mxu0 0
    %65 = vmatpush2.bf16.msra.mxu0 0
    %66 = vmatprep.subr.bf16.mxu0 0
    %67 = vmatpush2.bf16.msra.mxu0 0
    %68 = vmatprep.subr.bf16.mxu0 0
    %69 = vmatpush2.bf16.msra.mxu0 0
    %70 = vmatprep.subr.bf16.mxu0 0
    %71 = vmatpush2.bf16.msra.mxu0 0
    %72 = vmatprep.subr.bf16.mxu0 0
    %73 = vmatpush2.bf16.msra.mxu0 0
    %74 = vmatprep.subr.bf16.mxu0 0
    %75 = vmatpush2.bf16.msra.mxu0 0
    %76 = vmatprep.mubr.bf16.mxu0 0
    %77 = vmatmul.mubr.bf16.gmra.mxu0 %v42
    %v78 = vpop.f32.mrf.mxu0
    %v79 = vadd.f32 %v26, %v78
    %v80 = vpop.f32.mrf.mxu0
    %v81 = vpop.f32.mrf.mxu0
    %v82 = vpop.f32.mrf.mxu0
    %83 = vdwg.mxu0
    %v84 = vxor.u32 %v79, 2147483648
    %v85 = vmul.f32 %v84, 1.442695
    %v86 = vpow.pop %v85
    %v87 = vadd.f32 %v86, 1.0
    %v88 = vrcp.pop %v87
    %v89 = vmul.f32 1.0, %v88
    %vm90 = vcmask 58368
    %91 = vst.msk [vmem:[#allocation2] sm:$0x3] %vm90, %v89
    // Predicated region
    $region14: #{tile_classifier_head.1} parent=1 // pred_check
      _
    $region15: #{tile_classifier_head.1} parent=1 // pred_check_branch
      %93 = sbr.rel (0) target = $region17
    $region16: #{tile_classifier_head.1} parent=1 // pred_region
      %s95 = ssub.s32 32, 32
      %96 = vsyncadd [#allocation3], %s95
      %s98 = sshll.u32 [#allocation2], 4
      %s99 = int_to_ptr.vmem [resolvable:$true] %s98
      %101 = dma.vmem_to_hbm [thread:$0]  %s99, 32, %s3, [#allocation3]
    $region17: #{tile_classifier_head.1} parent=1 // pred_fallthru
      _
    // Predicated region
    $region18: #{tile_classifier_head.1} parent=1 // pred_check
      _
    $region19: #{tile_classifier_head.1} parent=1 // pred_check_branch
      %103 = sbr.rel (0) target = $region21
    $region20: #{tile_classifier_head.1} parent=1 // pred_region
      %104 = dma.done [#allocation3], 32
    $region21: #{tile_classifier_head.1} parent=1 // pred_fallthru
      _
    %105 = vsyncpa [#allocation3], 1

</llo_original>
